<compile_context>
chip_gen: v7x
topology: tpu7x:2x2x1
jax: 0.10.0
libtpu: 0.0.40
codegen_flags: <defaults>
</compile_context>

<pallas_src>
import math

import jax
import jax.numpy as jnp
from jax.experimental import pallas as pl
from jax.experimental.pallas import tpu as pltpu


_TARGET_TILE_BYTES = 4 * 1024 * 1024   # ~4 MiB x tile per grid step
_VMEM_LIMIT_BYTES = 48 * 1024 * 1024   # leaves headroom even on v7x (64 MiB phys)


def make_positional_encoding(d_model: int, max_len: int) -> jnp.ndarray:
    """Sinusoidal positional-encoding table, shape (max_len, d_model), float32."""
    position = jnp.arange(max_len, dtype=jnp.float32)[:, None]                 # (L, 1)
    div_term = jnp.exp(
        jnp.arange(0, d_model, 2, dtype=jnp.float32) * (-math.log(10000.0) / d_model)
    )                                                                          # (D/2,)
    angles = position * div_term                                               # (L, D/2)
    pe = jnp.zeros((max_len, d_model), dtype=jnp.float32)
    pe = pe.at[:, 0::2].set(jnp.sin(angles))
    pe = pe.at[:, 1::2].set(jnp.cos(angles))
    return pe


def _pe_add_kernel(x_ref, pe_ref, o_ref):
    # Per-example mode : x/pe/o are (TR, C) tiles.
    # Merged-batch mode: x/o are (TB, R, C); pe is (R, C) and broadcasts over TB.
    o_ref[...] = (x_ref[...] + pe_ref[...]).astype(o_ref.dtype)


def _sublane(itemsize: int) -> int:
    """Dtype-native sublane pack: 8 for 4-byte, 16 for 2-byte, 32 for 1-byte."""
    return max(8, 32 // max(1, itemsize))


def _pick_row_tile(R: int, row_bytes: int, sub: int,
                   target_bytes: int, min_tiles: int = 1) -> int:
    """Rows per tile: a multiple of `sub` (or the full extent R), sized so one
    tile is ~target_bytes, with at least `min_tiles` tiles when R allows."""
    if R <= sub:
        return R
    if min_tiles <= 1 and R * row_bytes <= target_bytes:
        return R                                   # whole extent fits one tile
    max_rows = max(sub, (target_bytes // max(1, row_bytes)) // sub * sub)
    if min_tiles > 1:
        cap = max(sub, (-(-R // min_tiles)) // sub * sub)
        max_rows = min(max_rows, cap)
    tr = max(sub, min(R // sub * sub, max_rows))
    for cand in range(tr, sub - 1, -sub):          # prefer a divisor (no ragged edge)
        if R % cand == 0:
            return cand
    return tr                                      # cdiv grid + write-masking handles edge


def _pick_batch_tile(B: int, slab_bytes: int, target_bytes: int) -> int:
    """Examples per tile in merged-batch mode (~target_bytes per grid step)."""
    tb = min(B, max(1, target_bytes // max(1, slab_bytes)))
    if B >= 2 and tb >= B:
        tb = -(-B // 2)      # keep >= 2 parallel steps for the two v7x TensorCores
    return tb


def positional_encoding_forward(x: jnp.ndarray, pe: jnp.ndarray, pos=None) -> jnp.ndarray:
    """x: (B, S, D), pe: (max_len, D). Returns x + pe rows, broadcast over batch."""
    B, S, D = x.shape
    max_len = pe.shape[0]

    if pos is None:
        if S > max_len:
            raise ValueError(f"seq_len {S} exceeds max_len {max_len}")
        pe_rows = pe[:S]
    else:
        # PyTorch `x + self.pe[:, pos]` semantics (row(s) broadcast over batch/seq).
        # OOB indices are clamped by jnp.take; caller must pass pos < max_len.
        pos_arr = jnp.atleast_1d(jnp.asarray(pos, dtype=jnp.int32))
        pe_rows = jnp.broadcast_to(jnp.take(pe, pos_arr, axis=0), (S, D))

    # Cast table to x's dtype (halves pe DMA bytes for bf16; avoids mixed-dtype add).
    pe_rows = pe_rows.astype(x.dtype)
    itemsize = jnp.dtype(x.dtype).itemsize
    sub = _sublane(itemsize)

    # ---- lane-dense (R, C) view of the per-example slab ----------------------
    if D % 128 == 0:
        R, C = S, D                        # already lane dense
    elif (S * D) % 128 == 0:
        R, C = (S * D) // 128, 128         # flatten -> unmasked 128-lane stores
    else:
        R, C = S, D                        # rare ragged case: masked stores accepted
    x2 = x.reshape(B, R, C)
    pe2 = pe_rows.reshape(R, C)

    row_bytes = C * itemsize
    slab_bytes = R * row_bytes

    cost = pl.CostEstimate(
        flops=B * S * D,
        transcendentals=0,
        bytes_accessed=(2 * B * S * D + S * D) * itemsize,
    )

    if slab_bytes >= _TARGET_TILE_BYTES:
        # Per-example tiling: grid (R_tiles, B); R outermost so the pe block
        # index is constant across the inner batch axis (fetched once/outer step).
        min_tiles = 2 if B == 1 else 1     # >= 2 parallel steps for v7x dual-TC
        TR = _pick_row_tile(R, row_bytes, sub, _TARGET_TILE_BYTES, min_tiles)
        grid = (pl.cdiv(R, TR), B)
        in_specs = [
            pl.BlockSpec((None, TR, C), lambda r, b: (b, r, 0)),   # batch squeezed
            pl.BlockSpec((TR, C), lambda r, b: (r, 0)),
        ]
        out_specs = pl.BlockSpec((None, TR, C), lambda r, b: (b, r, 0))
        dims = ("parallel", "parallel")
    else:
        # Small per-example slab (short S / toy shapes): merge the batch axis
        # into the block so each grid step moves a decent chunk; pe is one
        # resident full-extent block (its index map is constant).
        TB = _pick_batch_tile(B, slab_bytes, _TARGET_TILE_BYTES)
        grid = (pl.cdiv(B, TB),)
        in_specs = [
            pl.BlockSpec((TB, R, C), lambda b: (b, 0, 0)),
            pl.BlockSpec((R, C), lambda b: (0, 0)),
        ]
        out_specs = pl.BlockSpec((TB, R, C), lambda b: (b, 0, 0))
        dims = ("parallel",)

    out = pl.pallas_call(
        _pe_add_kernel,
        out_shape=jax.ShapeDtypeStruct((B, R, C), x.dtype),
        grid_spec=pl.GridSpec(grid=grid, in_specs=in_specs, out_specs=out_specs),
        compiler_params=pltpu.CompilerParams(
            dimension_semantics=dims,
            vmem_limit_bytes=_VMEM_LIMIT_BYTES,
        ),
        cost_estimate=cost,
    )(x2, pe2)

    return out.reshape(B, S, D)


if __name__ == "__main__":
    d_model = 32
    max_len = 16
    B, S = 2, 8

    key = jax.random.PRNGKey(0)
    x = jax.random.normal(key, (B, S, d_model), dtype=jnp.float32)
    pe = make_positional_encoding(d_model, max_len)

    # --- default path: pos=None -> x + pe[:S]  (D=32 -> lane-densified view) ---
    out = positional_encoding_forward(x, pe)
    out = jax.block_until_ready(out)
    ref = x + pe[None, :S, :]
    assert out.shape == (B, S, d_model)
    assert jnp.allclose(out, ref, atol=1e-6), "mismatch vs reference (pos=None)"

    # --- explicit-pos path: x + pe[pos] -----------------------------------------
    pos = jnp.arange(4, 4 + S, dtype=jnp.int32)
    out_pos = positional_encoding_forward(x, pe, pos=pos)
    out_pos = jax.block_until_ready(out_pos)
    ref_pos = x + pe[None, 4:4 + S, :]
    assert jnp.allclose(out_pos, ref_pos, atol=1e-6), "mismatch vs reference (pos path)"

    # --- lane-dense d_model (multiple of 128) sanity check ----------------------
    d128 = 128
    x128 = jax.random.normal(jax.random.PRNGKey(1), (B, S, d128), dtype=jnp.float32)
    pe128 = make_positional_encoding(d128, max_len)
    out128 = jax.block_until_ready(positional_encoding_forward(x128, pe128))
    assert jnp.allclose(out128, x128 + pe128[None, :S, :], atol=1e-6), \
        "mismatch vs reference (d_model=128)"

    print("KERNEL_OK")
</pallas_src>

<mosaic_0001>
module attributes {stable_mosaic.version = 11 : i64} {
  func.func @_pe_add_kernel(%arg0: i32, %arg1: memref<1x2x128xf32, #tpu.memory_space<vmem>>, %arg2: memref<2x128xf32, #tpu.memory_space<vmem>>, %arg3: memref<1x2x128xf32, #tpu.memory_space<vmem>>) attributes {dimension_semantics = [#tpu.dimension_semantics<parallel>], iteration_bounds = array<i64: 2>, scalar_prefetch = 0 : i64, scratch_operands = 0 : i64, tpu.core_type = #tpu.core_type<tc>, window_params = [{transform_indices = @transform_0, window_bounds = array<i64: 1, 2, 128>}, {pipeline_mode = #tpu.pipeline_mode<synchronous>, transform_indices = @transform_1, window_bounds = array<i64: 2, 128>}, {transform_indices = @transform_2, window_bounds = array<i64: 1, 2, 128>}]} {
    %c0 = arith.constant 0 : index
    %c0_0 = arith.constant 0 : index
    %c0_1 = arith.constant 0 : index
    %0 = vector.load %arg1[%c0, %c0_0, %c0_1] : memref<1x2x128xf32, #tpu.memory_space<vmem>>, vector<1x2x128xf32>
    %c0_2 = arith.constant 0 : index
    %c0_3 = arith.constant 0 : index
    %1 = vector.load %arg2[%c0_2, %c0_3] : memref<2x128xf32, #tpu.memory_space<vmem>>, vector<2x128xf32>
    %2 = vector.shape_cast %1 : vector<2x128xf32> to vector<1x2x128xf32>
    %3 = arith.addf %0, %2 : vector<1x2x128xf32>
    %c0_4 = arith.constant 0 : index
    %c0_5 = arith.constant 0 : index
    %c0_6 = arith.constant 0 : index
    %4 = vector.load %arg3[%c0_4, %c0_5, %c0_6] : memref<1x2x128xf32, #tpu.memory_space<vmem>>, vector<1x2x128xf32>
    tpu.vector_store %arg3[%c0_4, %c0_5, %c0_6], %3 {strides = array<i32>} : memref<1x2x128xf32, #tpu.memory_space<vmem>>, vector<1x2x128xf32>,
    return
  }
  func.func @transform_0(%arg0: i32) -> (i32, i32, i32) {
    %c0_i32 = arith.constant 0 : i32
    %c0_i32_0 = arith.constant 0 : i32
    %c0_i32_1 = arith.constant 0 : i32
    return %arg0, %c0_i32, %c0_i32_0 : i32, i32, i32
  }
  func.func @transform_1(%arg0: i32) -> (i32, i32) {
    %c0_i32 = arith.constant 0 : i32
    %c0_i32_0 = arith.constant 0 : i32
    %c0_i32_1 = arith.constant 0 : i32
    return %c0_i32, %c0_i32_0 : i32, i32
  }
  func.func @transform_2(%arg0: i32) -> (i32, i32, i32) {
    %c0_i32 = arith.constant 0 : i32
    %c0_i32_0 = arith.constant 0 : i32
    %c0_i32_1 = arith.constant 0 : i32
    return %arg0, %c0_i32, %c0_i32_0 : i32, i32, i32
  }
}

</mosaic_0001>

<llo_original>
// kernel: tpu_custom_call.1
$region0: #{tpu_custom_call.1}
  #allocation0 [shape = 'u32[]', space=smem, size = 0x4, offset = 0x4, fixed_abs, tag = 'smem constant byte address 0x4 - core index']
  #allocation1 [shape = 'u32[144,128]{1,0:T(1,128)}', space=vmem, size = 0x12000, scoped, tag = 'internal scratch']
  %s0 = inlined_call_operand.hbm [shape: f32[2,2,128], index: 0, kind: input, shape index: {}]
  %s1 = inlined_call_operand.vmem [shape: f32[2,128], index: 1, kind: input, shape index: {}]
  %s2 = inlined_call_operand.hbm [shape: f32[2,2,128], index: 2, kind: output, shape index: {}]
  %s3 = sld [smem:[#allocation0]]
  $region45: #{tpu_custom_call.1} parent=0
    _
  %s5 = ssub.s32 1, %s3
  %s6 = scalar_select 0, %s5, %s3
  $region1: #{tpu_custom_call.1} parent=0
    #allocation2 [shape = 'u8[2048]{0}', space=vmem, size = 0x800, scoped, tag = 'input window, operand 0']
    #allocation3 [shape = 's32[2]{0}', space=sflag, size = 0x8, scoped, tag = 'scoped memory for tpu_custom_call.1']
    #allocation4 [shape = 's32[2]{0}', space=sflag, size = 0x8, scoped, tag = 'scoped memory for tpu_custom_call.1']
    #allocation5 [shape = 'u8[2048]{0}', space=vmem, size = 0x800, scoped, tag = 'output window, operand 0']
    %7 = vsyncpa [#allocation3], 0
    %s8 = scalar_lea.sflag [#allocation3], 1
    %9 = vsyncpa %s8, 0
    %10 = vsyncpa [#allocation4], 0
    %s11 = scalar_lea.sflag [#allocation4], 1
    %12 = vsyncpa %s11, 0
    loop: start=0, step=1, limit=4
    $region2: #{tpu_custom_call.1} parent=1 // loop_pre_header
      _
    $region3: #{tpu_custom_call.1} parent=1 // loop_header
      %s14 = sphi 0, %s18
      %p15 = scmp.ge.s32.totalorder %s14, 4
      %s24 = sphi 0, %s26
      %s27 = sphi 0, %s24
      %s28 = sphi 0, %s27
      %s44 = sphi 0, %s28
      %s48 = sphi 0, %s48
      %s50 = sphi 0, %s48
      %s51 = sphi 0, %s50
      %s65 = sphi 0, %s51
      %s71 = sphi 0, %s73
      %s74 = sphi 0, %s71
      %s75 = sphi 0, %s74
      %s91 = sphi 0, %s75
    $region4: #{tpu_custom_call.1} parent=1 // loop_header_branch
      %17 = sbr.rel (%p15) target = $region8
    $region5: #{tpu_custom_call.1} parent=1 // loop_body
      %s19 = ssub.s32 %s14, 1
      %s20 = ssub.s32 %s14, 2
      %s21 = sadd.s32 %s14, 1
      %s22 = ssub.s32 %s14, %s21
      %p23 = scmp.eq.s32.totalorder %s22, 0
      %s25 = sadd.s32 %s24, 1
      %s26 = scalar_select %p23, %s24, %s25
      %p29 = pneg %p23
      %p30 = scmp.eq.s32.totalorder %s14, 1
      %p31 = por %p29, %p30
      %p32 = scmp.ne.s32.totalorder %s24, %s27
      %p33 = scmp.eq.s32.totalorder %s14, 0
      %p34 = por %p32, %p33
      %p35 = scmp.ne.s32.totalorder %s24, %s27
      %p36 = scmp.eq.s32.totalorder %s19, 1
      %p37 = por %p35, %p36
      %p38 = scmp.ne.s32.totalorder %s27, %s28
      %p39 = scmp.eq.s32.totalorder %s19, 0
      %p40 = por %p38, %p39
      %p41 = scmp.ne.s32.totalorder %s27, %s28
      %p42 = scmp.eq.s32.totalorder %s20, 1
      %p43 = por %p41, %p42
      %p45 = scmp.ne.s32.totalorder %s28, %s44
      %p46 = scmp.eq.s32.totalorder %s20, 0
      %p47 = por %p45, %p46
      %s49 = sadd.s32 %s48, 1
      %p52 = scmp.eq.s32.totalorder %s14, 1
      %p53 = scmp.ne.s32.totalorder %s48, %s50
      %p54 = scmp.eq.s32.totalorder %s14, 0
      %p55 = por %p53, %p54
      %p56 = scmp.ne.s32.totalorder %s48, %s50
      %p57 = scmp.eq.s32.totalorder %s19, 1
      %p58 = por %p56, %p57
      %p59 = scmp.ne.s32.totalorder %s50, %s51
      %p60 = scmp.eq.s32.totalorder %s19, 0
      %p61 = por %p59, %p60
      %p62 = scmp.ne.s32.totalorder %s50, %s51
      %p63 = scmp.eq.s32.totalorder %s20, 1
      %p64 = por %p62, %p63
      %p66 = scmp.ne.s32.totalorder %s51, %s65
      %p67 = scmp.eq.s32.totalorder %s20, 0
      %p68 = por %p66, %p67
      %s69 = ssub.s32 %s14, %s21
      %p70 = scmp.eq.s32.totalorder %s69, 0
      %s72 = sadd.s32 %s71, 1
      %s73 = scalar_select %p70, %s71, %s72
      %p76 = pneg %p70
      %p77 = scmp.eq.s32.totalorder %s14, 1
      %p78 = por %p76, %p77
      %p79 = scmp.ne.s32.totalorder %s71, %s74
      %p80 = scmp.eq.s32.totalorder %s14, 0
      %p81 = por %p79, %p80
      %p82 = scmp.ne.s32.totalorder %s71, %s74
      %p83 = scmp.eq.s32.totalorder %s19, 1
      %p84 = por %p82, %p83
      %p85 = scmp.ne.s32.totalorder %s74, %s75
      %p86 = scmp.eq.s32.totalorder %s19, 0
      %p87 = por %p85, %p86
      %p88 = scmp.ne.s32.totalorder %s74, %s75
      %p89 = scmp.eq.s32.totalorder %s20, 1
      %p90 = por %p88, %p89
      %p92 = scmp.ne.s32.totalorder %s75, %s91
      %p93 = scmp.eq.s32.totalorder %s20, 0
      %p94 = por %p92, %p93
      %p95 = scmp.le.s32.totalorder 1, %s14
      %p96 = scmp.lt.s32.totalorder %s14, 3
      %p97 = pnand %p95, %p96
      %p98 = pneg %p97
      // Predicated region
      $region9: #{tpu_custom_call.1} parent=5 // pred_check
        _
      $region10: #{tpu_custom_call.1} parent=5 // pred_check_branch
        %100 = sbr.rel (%p97) target = $region12
      $region11: #{tpu_custom_call.1} parent=5 // pred_region
        %s101 = ssub.s32 %s14, 1
        // Predicated region
        $region13: #{tpu_custom_call.1} parent=11 // pred_check
          %p102 = pneg %p61
        $region14: #{tpu_custom_call.1} parent=11 // pred_check_branch
          %104 = sbr.rel (%p102) target = $region16
        $region15: #{tpu_custom_call.1} parent=11 // pred_region
          _
        $region16: #{tpu_custom_call.1} parent=11 // pred_fallthru
          _
      $region12: #{tpu_custom_call.1} parent=5 // pred_fallthru
        _
      %p105 = scmp.lt.s32.totalorder %s14, 2
      // Predicated region
      $region17: #{tpu_custom_call.1} parent=5 // pred_check
        %p106 = pneg %p105
      $region18: #{tpu_custom_call.1} parent=5 // pred_check_branch
        %108 = sbr.rel (%p106) target = $region20
      $region19: #{tpu_custom_call.1} parent=5 // pred_region
        // Predicated region
        $region21: #{tpu_custom_call.1} parent=19 // pred_check
          %p109 = pneg %p34
        $region22: #{tpu_custom_call.1} parent=19 // pred_check_branch
          %111 = sbr.rel (%p109) target = $region24
        $region23: #{tpu_custom_call.1} parent=19 // pred_region
          %s112 = sand.u32 %s24, 1
          %s113 = scalar_lea.sflag [#allocation3], %s112
          %s114 = sand.u32 %s24, 1
          %s115 = smul.addr %s114, 2
          %s116 = scalar_lea.vmem [#allocation2], %s115
          %s118 = ssub.s32 32, 32
          %119 = vsyncadd %s113, %s118
          %s120 = smul.addr %s14, 32
          %s121 = scalar_lea.hbm %s0, %s120
          %s123 = sshll.u32 %s116, 4
          %s124 = int_to_ptr.vmem [resolvable:$true] %s123
          %126 = dma.hbm_to_vmem [thread:$0]  %s121, 32, %s124, %s113
        $region24: #{tpu_custom_call.1} parent=19 // pred_fallthru
          _
      $region20: #{tpu_custom_call.1} parent=5 // pred_fallthru
        _
      %p127 = scmp.le.s32.totalorder 1, %s14
      %p128 = scmp.lt.s32.totalorder %s14, 3
      %p129 = pnand %p127, %p128
      %p130 = pneg %p129
      // Predicated region
      $region25: #{tpu_custom_call.1} parent=5 // pred_check
        _
      $region26: #{tpu_custom_call.1} parent=5 // pred_check_branch
        %132 = sbr.rel (%p129) target = $region28
      $region27: #{tpu_custom_call.1} parent=5 // pred_region
        %s133 = ssub.s32 %s14, 1
        %s134 = sand.u32 %s27, 1
        %s135 = scalar_lea.sflag [#allocation3], %s134
        %s136 = sand.u32 %s27, 1
        %s137 = smul.addr %s136, 2
        %s138 = scalar_lea.vmem [#allocation2], %s137
        // Predicated region
        $region29: #{tpu_custom_call.1} parent=27 // pred_check
          %p139 = pneg %p40
        $region30: #{tpu_custom_call.1} parent=27 // pred_check_branch
          %141 = sbr.rel (%p139) target = $region32
        $region31: #{tpu_custom_call.1} parent=27 // pred_region
          %142 = dma.done %s135, 32
        $region32: #{tpu_custom_call.1} parent=27 // pred_fallthru
          _
        %s143 = sand.u32 %s27, 1
        %s144 = scalar_lea.sflag [#allocation3], %s143
        %s145 = sand.u32 %s27, 1
        %s146 = smul.addr %s145, 2
        %s147 = scalar_lea.vmem [#allocation2], %s146
        %p148 = pneg %p40
        %p149 = pneg %p37
        %p150 = pneg %p61
        %p151 = pneg %p58
        %p152 = pneg %p87
        %p153 = pneg %p84
        %s154 = sand.u32 %s74, 1
        %s155 = scalar_lea.sflag [#allocation4], %s154
        %s156 = sand.u32 %s74, 1
        %s157 = smul.addr %s156, 2
        %s158 = scalar_lea.vmem [#allocation5], %s157
        %v159 = vld [vmem:[%s138] sm:$0x3]
        %v160 = vld [vmem:[%s1] sm:$0x3]
        %v161 = vadd.f32 %v159, %v160
        %162 = vst [vmem:[%s158] sm:$0x3] %v161
        %s163 = sand.u32 %s74, 1
        %s164 = scalar_lea.sflag [#allocation4], %s163
        %s165 = sand.u32 %s74, 1
        %s166 = smul.addr %s165, 2
        %s167 = scalar_lea.vmem [#allocation5], %s166
        // Predicated region
        $region33: #{tpu_custom_call.1} parent=27 // pred_check
          %p168 = pneg %p84
        $region34: #{tpu_custom_call.1} parent=27 // pred_check_branch
          %170 = sbr.rel (%p168) target = $region36
        $region35: #{tpu_custom_call.1} parent=27 // pred_region
          %s172 = ssub.s32 32, 32
          %173 = vsyncadd %s164, %s172
          %s174 = smul.addr %s19, 32
          %s175 = scalar_lea.hbm %s2, %s174
          %s177 = sshll.u32 %s167, 4
          %s178 = int_to_ptr.vmem [resolvable:$true] %s177
          %180 = dma.vmem_to_hbm [thread:$0]  %s178, 32, %s175, %s164
        $region36: #{tpu_custom_call.1} parent=27 // pred_fallthru
          _
      $region28: #{tpu_custom_call.1} parent=5 // pred_fallthru
        _
      %p181 = scmp.le.s32.totalorder 2, %s14
      // Predicated region
      $region37: #{tpu_custom_call.1} parent=5 // pred_check
        %p182 = pneg %p181
      $region38: #{tpu_custom_call.1} parent=5 // pred_check_branch
        %184 = sbr.rel (%p182) target = $region40
      $region39: #{tpu_custom_call.1} parent=5 // pred_region
        %s185 = ssub.s32 %s14, 2
        // Predicated region
        $region41: #{tpu_custom_call.1} parent=39 // pred_check
          %p186 = pneg %p90
        $region42: #{tpu_custom_call.1} parent=39 // pred_check_branch
          %188 = sbr.rel (%p186) target = $region44
        $region43: #{tpu_custom_call.1} parent=39 // pred_region
          %s189 = sand.u32 %s75, 1
          %s190 = scalar_lea.sflag [#allocation4], %s189
          %s191 = sand.u32 %s75, 1
          %s192 = smul.addr %s191, 2
          %s193 = scalar_lea.vmem [#allocation5], %s192
          %194 = dma.done %s190, 32
        $region44: #{tpu_custom_call.1} parent=39 // pred_fallthru
          _
      $region40: #{tpu_custom_call.1} parent=5 // pred_fallthru
        _
    $region6: #{tpu_custom_call.1} parent=1 // loop_footer
      %s18 = sadd.s32 1, %s14
    $region7: #{tpu_custom_call.1} parent=1 // loop_footer_branch
      %13 = sbr.rel target = $region3
    $region8: #{tpu_custom_call.1} parent=1 // loop_exit
      _
    %195 = vsyncpa [#allocation3], 1
    %s196 = scalar_lea.sflag [#allocation3], 1
    %197 = vsyncpa %s196, 1
    %198 = vsyncpa [#allocation4], 1
    %s199 = scalar_lea.sflag [#allocation4], 1
    %200 = vsyncpa %s199, 1

</llo_original>
